<compile_context>
chip_gen: v7x
topology: tpu7x:2x2x1
jax: 0.10.0
libtpu: 0.0.40
codegen_flags: <defaults>
</compile_context>

<pallas_src>
import math

import jax
import jax.numpy as jnp
from jax.experimental import pallas as pl
from jax.experimental.pallas import tpu as pltpu


_TARGET_TILE_BYTES = 2 << 20  # ~2 MiB per operand tile (safe on v5e/v6e/v7x)


def make_positional_encoding(d_model: int, max_len: int = 5000,
                             dtype=jnp.float32) -> jnp.ndarray:
    """Deterministic sinusoidal PE buffer, identical math to the nn.Module."""
    position = jnp.arange(max_len, dtype=jnp.float32)[:, None]          # [max_len, 1]
    div_term = jnp.exp(
        jnp.arange(0, d_model, 2, dtype=jnp.float32)
        * (-math.log(10000.0) / d_model)
    )                                                                    # [ceil(d/2)]
    pe = jnp.zeros((max_len, d_model), dtype=jnp.float32)
    pe = pe.at[:, 0::2].set(jnp.sin(position * div_term))
    # Guard odd d_model: the cos slice has one fewer column than div_term.
    pe = pe.at[:, 1::2].set(jnp.cos(position * div_term)[:, : d_model // 2])
    return pe.astype(dtype)


def _pe_add_kernel(x_ref, pe_ref, o_ref):
    # Elementwise add of the positional-encoding tile onto the input tile.
    # The pe tile is cast here (per streamed tile) instead of materializing a
    # full [max_len, d_model] cast copy in HBM in the wrapper.
    o_ref[...] = x_ref[...] + pe_ref[...].astype(x_ref.dtype)


def _sublanes(dtype) -> int:
    return 16 if jnp.dtype(dtype).itemsize < 4 else 8


def _tiled_rowwise_add(x, pe_full, tile_rows=None,
                       target_tile_bytes=_TARGET_TILE_BYTES):
    """x: [S, D], pe_full: [L, D] with L >= S.  Returns x + pe_full[:S].

    Streams the *full* pe buffer; only the first ceil(S/tile) blocks are ever
    DMA'd, so no slice copy is materialized.
    """
    s, d = x.shape
    itemsize = jnp.dtype(x.dtype).itemsize
    # Sublane alignment must satisfy both streamed dtypes.
    sub = max(_sublanes(x.dtype), _sublanes(pe_full.dtype))

    if tile_rows is None:
        row_bytes = d * itemsize
        # Largest sublane-aligned tile under the per-operand byte budget
        # (no artificial row cap -- bigger tiles amortize the ~0.35us/step
        # grid overhead on this mem-bound op).
        cap_rows = (target_tile_bytes // max(row_bytes, 1)) // sub * sub
        cap_rows = max(cap_rows, sub)
        # Keep >= 2 blocks when the sequence allows it so v7x's two
        # TensorCores both get work (harmless on v5e/v6e).
        half_rows = (pl.cdiv(s, 2) // sub) * sub
        tile_rows = min(cap_rows, half_rows) if half_rows >= sub else 0

    if tile_rows <= 0 or tile_rows >= s:
        # Single full-extent block (block_shape == array dims is always legal
        # for x / out).  For pe, a block of s rows with s not a sublane
        # multiple would violate the (8,128) rule, so take the (tiny) slice.
        tile_rows = s
        grid = (1,)
        if s % 8 != 0:
            pe_full = pe_full[:s]
    else:
        # Enforce the (8,128)/(16,128) block constraint on user-given tiles.
        tile_rows = max(sub, (tile_rows // sub) * sub)
        grid = (pl.cdiv(s, tile_rows),)

    tile_bytes = tile_rows * d * itemsize
    # 3 streams (x, pe, out) x 2 pipeline buffers + headroom; floor keeps the
    # compiler comfortable, cap stays inside v7x's 64 MiB physical VMEM.
    vmem_limit = int(min(max(6 * tile_bytes + (8 << 20), 16 << 20), 64 << 20))

    return pl.pallas_call(
        _pe_add_kernel,
        out_shape=jax.ShapeDtypeStruct((s, d), x.dtype),
        grid=grid,
        in_specs=[
            pl.BlockSpec((tile_rows, d), lambda i: (i, 0)),
            # Full pe buffer; index_map reads row-block i, matching x's rows.
            pl.BlockSpec((tile_rows, d), lambda i: (i, 0)),
        ],
        out_specs=pl.BlockSpec((tile_rows, d), lambda i: (i, 0)),
        compiler_params=pltpu.CompilerParams(
            # Row tiles are independent -> shard across v7x's 2 TensorCores.
            dimension_semantics=("parallel",),
            vmem_limit_bytes=vmem_limit,
        ),
    )(x, pe_full)


def positional_encoding_forward(x: jnp.ndarray, pe: jnp.ndarray,
                                tile_rows=None) -> jnp.ndarray:
    """x: [seq_len, d_model]; returns x + pe[:seq_len] (forward of the module)."""
    seq_len, d_model = x.shape
    max_len = pe.shape[0]
    assert pe.shape[1] == d_model and max_len >= seq_len
    # NOTE: no full-table pe.astype() here -- dtype mismatch is handled per
    # streamed tile inside the kernel, avoiding a [max_len, d_model] HBM
    # round trip on every forward.

    # Path A: lane-dense repack whenever d_model does not already fill the
    # 128-lane minor dim evenly and the element counts divide.  A row-major
    # reshape to [*, 128] is free (no data movement) and turns masked
    # partial-lane stores into full 128-lane vst.
    lane_dense_ok = (
        tile_rows is None
        and d_model % 128 != 0
        and (seq_len * d_model) % 128 == 0
        and (max_len * d_model) % 128 == 0
    )
    if lane_dense_ok:
        x_slab = x.reshape(seq_len * d_model // 128, 128)
        pe_slab = pe.reshape(max_len * d_model // 128, 128)
        out = _tiled_rowwise_add(x_slab, pe_slab)
        return out.reshape(seq_len, d_model)

    # Path B: general row-tiled add streaming the full pe buffer (tiny
    # sequences collapse to one full-extent block inside).
    return _tiled_rowwise_add(x, pe, tile_rows=tile_rows)


if __name__ == "__main__":
    max_len = 64  # small synthetic buffer for the test

    key = jax.random.PRNGKey(0)
    k1, k2, k3, k4 = jax.random.split(key, 4)

    pe32 = make_positional_encoding(32, max_len=max_len)
    pe48 = make_positional_encoding(48, max_len=max_len)

    checks = []

    # 1) seq_len=8, d=32 -> lane-dense slab, single full-extent block (2x128).
    x1 = jax.random.normal(k1, (8, 32), dtype=jnp.float32)
    o1 = jax.block_until_ready(positional_encoding_forward(x1, pe32))
    checks.append((o1, x1 + pe32[:8]))

    # 2) seq_len=32, d=32 -> lane-dense slab, one aligned (8,128) block.
    x2 = jax.random.normal(k2, (32, 32), dtype=jnp.float32)
    o2 = jax.block_until_ready(positional_encoding_forward(x2, pe32))
    checks.append((o2, x2 + pe32[:32]))

    # 3) seq_len=20, explicit 8-row tile -> row-tiled path with cdiv grid and
    #    a masked ragged final block (ragged seq_len handling).
    x3 = jax.random.normal(k3, (20, 32), dtype=jnp.float32)
    o3 = jax.block_until_ready(positional_encoding_forward(x3, pe32, tile_rows=8))
    checks.append((o3, x3 + pe32[:20]))

    # 4) seq_len=40, d=48 -> relaxed lane-dense gate (48 !| 128), multi-block
    #    slab grid with a ragged final slab block.
    x4 = jax.random.normal(k4, (40, 48), dtype=jnp.float32)
    o4 = jax.block_until_ready(positional_encoding_forward(x4, pe48))
    checks.append((o4, x4 + pe48[:40]))

    for out, ref in checks:
        assert out.shape == ref.shape
        assert jnp.allclose(out, ref, atol=1e-6), "mismatch vs reference"

    print("KERNEL_OK")
</pallas_src>

<mosaic_0001>
module attributes {stable_mosaic.version = 11 : i64} {
  func.func @_pe_add_kernel(%arg0: i32, %arg1: memref<2x128xf32, #tpu.memory_space<vmem>>, %arg2: memref<2x128xf32, #tpu.memory_space<vmem>>, %arg3: memref<2x128xf32, #tpu.memory_space<vmem>>) attributes {dimension_semantics = [#tpu.dimension_semantics<parallel>], iteration_bounds = array<i64: 1>, scalar_prefetch = 0 : i64, scratch_operands = 0 : i64, tpu.core_type = #tpu.core_type<tc>, window_params = [{transform_indices = @transform_0, window_bounds = array<i64: 2, 128>}, {transform_indices = @transform_1, window_bounds = array<i64: 2, 128>}, {transform_indices = @transform_2, window_bounds = array<i64: 2, 128>}]} {
    %c0 = arith.constant 0 : index
    %c0_0 = arith.constant 0 : index
    %0 = vector.load %arg1[%c0, %c0_0] : memref<2x128xf32, #tpu.memory_space<vmem>>, vector<2x128xf32>
    %c0_1 = arith.constant 0 : index
    %c0_2 = arith.constant 0 : index
    %1 = vector.load %arg2[%c0_1, %c0_2] : memref<2x128xf32, #tpu.memory_space<vmem>>, vector<2x128xf32>
    %2 = arith.addf %0, %1 : vector<2x128xf32>
    %c0_3 = arith.constant 0 : index
    %c0_4 = arith.constant 0 : index
    %3 = vector.load %arg3[%c0_3, %c0_4] : memref<2x128xf32, #tpu.memory_space<vmem>>, vector<2x128xf32>
    tpu.vector_store %arg3[%c0_3, %c0_4], %2 {strides = array<i32>} : memref<2x128xf32, #tpu.memory_space<vmem>>, vector<2x128xf32>,
    return
  }
  func.func @transform_0(%arg0: i32) -> (i32, i32) {
    %c0_i32 = arith.constant 0 : i32
    %c0_i32_0 = arith.constant 0 : i32
    return %arg0, %c0_i32 : i32, i32
  }
  func.func @transform_1(%arg0: i32) -> (i32, i32) {
    %c0_i32 = arith.constant 0 : i32
    %c0_i32_0 = arith.constant 0 : i32
    return %arg0, %c0_i32 : i32, i32
  }
  func.func @transform_2(%arg0: i32) -> (i32, i32) {
    %c0_i32 = arith.constant 0 : i32
    %c0_i32_0 = arith.constant 0 : i32
    return %arg0, %c0_i32 : i32, i32
  }
}

</mosaic_0001>

<llo_original>
// kernel: tpu_custom_call.1
$region0: #{tpu_custom_call.1}
  #allocation0 [shape = 'u32[]', space=smem, size = 0x4, offset = 0x4, fixed_abs, tag = 'smem constant byte address 0x4 - core index']
  #allocation1 [shape = 'u32[144,128]{1,0:T(1,128)}', space=vmem, size = 0x12000, scoped, tag = 'internal scratch']
  %s0 = inlined_call_operand.hbm [shape: f32[2,128], index: 0, kind: input, shape index: {}]
  %s1 = inlined_call_operand.vmem [shape: f32[2,128], index: 1, kind: input, shape index: {}]
  %s2 = inlined_call_operand.hbm [shape: f32[2,128], index: 2, kind: output, shape index: {}]
  %s3 = sld [smem:[#allocation0]]
  $region22: #{tpu_custom_call.1} parent=0
    _
  %s5 = ssub.s32 1, %s3
  %s6 = scalar_select 0, %s5, %s3
  $region1: #{tpu_custom_call.1} parent=0
    #allocation2 [shape = 'u8[1024]{0}', space=vmem, size = 0x400, scoped, tag = 'input window, operand 0, single buffered']
    #allocation3 [shape = 's32[1]{0}', space=sflag, size = 0x4, scoped, tag = 'scoped memory for tpu_custom_call.1']
    #allocation4 [shape = 's32[1]{0}', space=sflag, size = 0x4, scoped, tag = 'scoped memory for tpu_custom_call.1']
    #allocation5 [shape = 'u8[1024]{0}', space=vmem, size = 0x400, scoped, tag = 'output window, operand 0, single buffered']
    %7 = vsyncpa [#allocation3], 0
    %8 = vsyncpa [#allocation4], 0
    // Predicated region
    $region2: #{tpu_custom_call.1} parent=1 // pred_check
      _
    $region3: #{tpu_custom_call.1} parent=1 // pred_check_branch
      %10 = sbr.rel (0) target = $region5
    $region4: #{tpu_custom_call.1} parent=1 // pred_region
      %s12 = ssub.s32 32, 32
      %13 = vsyncadd [#allocation3], %s12
      %s15 = sshll.u32 [#allocation2], 4
      %s16 = int_to_ptr.vmem [resolvable:$true] %s15
      %18 = dma.hbm_to_vmem [thread:$0]  %s0, 32, %s16, [#allocation3]
    $region5: #{tpu_custom_call.1} parent=1 // pred_fallthru
      _
    // Predicated region
    $region6: #{tpu_custom_call.1} parent=1 // pred_check
      _
    $region7: #{tpu_custom_call.1} parent=1 // pred_check_branch
      %20 = sbr.rel (0) target = $region9
    $region8: #{tpu_custom_call.1} parent=1 // pred_region
      _
    $region9: #{tpu_custom_call.1} parent=1 // pred_fallthru
      _
    // Predicated region
    $region10: #{tpu_custom_call.1} parent=1 // pred_check
      _
    $region11: #{tpu_custom_call.1} parent=1 // pred_check_branch
      %22 = sbr.rel (0) target = $region13
    $region12: #{tpu_custom_call.1} parent=1 // pred_region
      %23 = dma.done [#allocation3], 32
    $region13: #{tpu_custom_call.1} parent=1 // pred_fallthru
      _
    %v24 = vld [vmem:[#allocation2] sm:$0x3]
    %v25 = vld [vmem:[%s1] sm:$0x3]
    %v26 = vadd.f32 %v24, %v25
    %27 = vst [vmem:[#allocation5] sm:$0x3] %v26
    // Predicated region
    $region14: #{tpu_custom_call.1} parent=1 // pred_check
      _
    $region15: #{tpu_custom_call.1} parent=1 // pred_check_branch
      %29 = sbr.rel (0) target = $region17
    $region16: #{tpu_custom_call.1} parent=1 // pred_region
      %s31 = ssub.s32 32, 32
      %32 = vsyncadd [#allocation4], %s31
      %s34 = sshll.u32 [#allocation5], 4
      %s35 = int_to_ptr.vmem [resolvable:$true] %s34
      %37 = dma.vmem_to_hbm [thread:$0]  %s35, 32, %s2, [#allocation4]
    $region17: #{tpu_custom_call.1} parent=1 // pred_fallthru
      _
    // Predicated region
    $region18: #{tpu_custom_call.1} parent=1 // pred_check
      _
    $region19: #{tpu_custom_call.1} parent=1 // pred_check_branch
      %39 = sbr.rel (0) target = $region21
    $region20: #{tpu_custom_call.1} parent=1 // pred_region
      %40 = dma.done [#allocation4], 32
    $region21: #{tpu_custom_call.1} parent=1 // pred_fallthru
      _
    %41 = vsyncpa [#allocation3], 1
    %42 = vsyncpa [#allocation4], 1

</llo_original>
